<compile_context>
chip_gen: v7x
topology: tpu7x:2x2x1
jax: 0.10.0
libtpu: 0.0.40
codegen_flags: <defaults>
</compile_context>

<pallas_src>
import functools

import jax
import jax.numpy as jnp
from jax.experimental import pallas as pl
from jax.experimental.pallas import tpu as pltpu

EDGE_LOSS_WEIGHT = 0.3
EPS = 1e-6


def _loss_kernel(x_ref, y_ref, out_ref, *, nc, H, W):
    """One grid step: partial L1 / edge sums over a (B, H*W) block of images."""
    B, L = x_ref.shape  # L == H * W, one image per lane-dense row

    # Ragged-tail mask: images past nc contribute exactly 0 (no wrapper pad).
    img = jax.lax.broadcasted_iota(jnp.int32, (B, 1), 0)
    valid = (pl.program_id(0) * B + img) < nc

    # tanh in f32 (EUP).  TODO(synk): for bf16 inputs on v6e/v7x tanh could run
    # in bf16 to halve EUP pushes (not valid on v5e); kept f32 for accuracy.
    tx = jnp.where(valid, jnp.tanh(x_ref[...].astype(jnp.float32)), 0.0)
    ty = jnp.where(valid, jnp.tanh(y_ref[...].astype(jnp.float32)), 0.0)

    # ---- plain tanh-L1 partial sum ----
    l1_sum = jnp.sum(jnp.abs(tx - ty))

    # ---- Sobel edge magnitude, fully in registers (no scratch) ----
    # Column index within each flattened image row.
    col = jax.lax.broadcasted_iota(jnp.int32, (1, L), 1)
    w_in = col % W
    has_left = w_in != 0                 # neighbour at c-1 exists
    has_right = w_in != (W - 1)          # neighbour at c+1 exists
    has_up = col >= W                    # neighbour at c-W exists
    has_down = col < (H - 1) * W         # neighbour at c+W exists

    # Positive-modulo static shifts (result[c] = t[c - shift], wrapping).
    left_s = 1 % L
    right_s = (L - 1) % L
    up_s = W % L
    down_s = (L - W) % L

    def shift(t, amount, mask):
        # Lane rotate (XLU slot, co-issues with VPU); wrapped / out-of-image
        # lanes masked to 0 == tanh(0), matching the conv's zero padding.
        return jnp.where(mask, pltpu.roll(t, amount, 1), 0.0)

    def sobel_mag(t):
        left = shift(t, left_s, has_left)      # t[r, w-1]
        right = shift(t, right_s, has_right)   # t[r, w+1]
        a = left - right                       # shared horizontal difference
        b = left + 2.0 * t + right             # shared horizontal smoothing
        gx = shift(a, up_s, has_up) + 2.0 * a + shift(a, down_s, has_down)
        gy = shift(b, up_s, has_up) - shift(b, down_s, has_down)
        return jnp.sqrt(jnp.maximum(gx * gx + gy * gy, EPS))

    edge_sum = jnp.sum(jnp.abs(sobel_mag(tx) - sobel_mag(ty)))

    # Per-block partials: sublane 0 = L1 sum, sublane 1 = edge sum.
    sub = jax.lax.broadcasted_iota(jnp.int32, (1, 2, 128), 1)
    out_ref[...] = jnp.where(sub == 0, l1_sum, edge_sum)


def _vmem_capacity_bytes():
    try:
        cap = getattr(pltpu.get_tpu_info(), "vmem_capacity_bytes", None)
        if cap:
            return int(cap)
    except Exception:
        pass
    return 64 << 20  # conservative default: v7x per-TensorCore physical VMEM


def tanh_l1_loss(x, y, edge_loss_weight=EDGE_LOSS_WEIGHT):
    if x.shape != y.shape:
        raise ValueError(f"Shapes of x and y do not match. x: {x.shape}, y: {y.shape}")
    N, C, H, W = x.shape
    # The module's Sobel filters are (1, 1, 3, 3) => single input channel.
    assert C == 1, "Sobel filters in the reference module are single-channel"
    nc = N * C
    L = H * W
    # Lane-dense, copy-free reshape: one image per row of H*W lanes.
    xr = x.reshape(nc, L)
    yr = y.reshape(nc, L)

    # ---- chip-aware block sizing (v5e/v6e: 128 MiB VMEM, v7x: 64 MiB) ----
    vmem_cap = _vmem_capacity_bytes()
    vmem_limit = max(32 << 20, min((vmem_cap * 3) // 4, 96 << 20))
    budget = vmem_cap // 3                       # in-flight-data target
    itemsize = jnp.dtype(x.dtype).itemsize
    per_img = L * (2 * 2 * itemsize              # x,y double-buffered pipeline
                   + 12 * 4)                     # f32 temporaries (tanh/Sobel)
    B = int(max(1, min(nc, budget // max(per_img, 1))))
    if nc >= 16:
        B = min(B, (nc + 1) // 2)                # keep >=2 grid steps (v7x: 2 TCs)
    if B < nc:
        # Sublane-tile rule: 2nd-minor block dim must be a multiple of 8
        # (or the full extent).
        B = (B // 8) * 8 if B >= 8 else min(nc, 8)
        B = min(B, nc)
    num_blocks = -(-nc // B)

    kernel = functools.partial(_loss_kernel, nc=nc, H=H, W=W)
    partial_sums = pl.pallas_call(
        kernel,
        out_shape=jax.ShapeDtypeStruct((num_blocks, 2, 128), jnp.float32),
        grid=(num_blocks,),
        in_specs=[
            pl.BlockSpec((B, L), lambda n: (n, 0)),
            pl.BlockSpec((B, L), lambda n: (n, 0)),
        ],
        out_specs=pl.BlockSpec((1, 2, 128), lambda n: (n, 0, 0)),
        compiler_params=pltpu.CompilerParams(
            # independent blocks -> both TensorCores on v7x; neutral on v5e/v6e
            dimension_semantics=("parallel",),
            vmem_limit_bytes=vmem_limit,
        ),
    )(xr, yr)

    cnt = jnp.float32(nc * H * W)
    l1_mean = jnp.sum(partial_sums[:, 0, 0]) / cnt
    edge_mean = jnp.sum(partial_sums[:, 1, 0]) / cnt
    # TODO(synk): forward only — jax.grad needs a custom_vjp / backward kernel.
    return (1.0 - edge_loss_weight) * l1_mean + edge_loss_weight * edge_mean


def _ref_loss(x, y, w=EDGE_LOSS_WEIGHT):
    tx, ty = jnp.tanh(x), jnp.tanh(y)
    l1 = jnp.mean(jnp.abs(tx - ty))
    sobel_x = jnp.array([[1., 0., -1.], [2., 0., -2.], [1., 0., -1.]], jnp.float32)
    sobel_y = sobel_x.T

    def conv(img, k):
        return jax.lax.conv_general_dilated(
            img, k.reshape(1, 1, 3, 3), (1, 1), ((1, 1), (1, 1)),
            dimension_numbers=("NCHW", "OIHW", "NCHW"))

    ex = jnp.sqrt(jnp.clip(conv(tx, sobel_x) ** 2 + conv(tx, sobel_y) ** 2, 1e-6))
    ey = jnp.sqrt(jnp.clip(conv(ty, sobel_x) ** 2 + conv(ty, sobel_y) ** 2, 1e-6))
    edge = jnp.mean(jnp.abs(ex - ey))
    return (1.0 - w) * l1 + w * edge


if __name__ == "__main__":
    key = jax.random.PRNGKey(0)
    kx, ky = jax.random.split(key)
    x = jax.random.normal(kx, (2, 1, 16, 16), jnp.float32)
    y = jax.random.normal(ky, (2, 1, 16, 16), jnp.float32)

    loss = tanh_l1_loss(x, y)
    jax.block_until_ready(loss)

    ref = _ref_loss(x, y)
    assert jnp.allclose(loss, ref, atol=1e-5, rtol=1e-4), (loss, ref)
    print("KERNEL_OK")
</pallas_src>

<mosaic_0001>
module attributes {stable_mosaic.version = 11 : i64} {
  func.func @_loss_kernel(%arg0: i32, %arg1: memref<2x256xf32, #tpu.memory_space<vmem>>, %arg2: memref<2x256xf32, #tpu.memory_space<vmem>>, %arg3: memref<1x2x128xf32, #tpu.memory_space<vmem>>) attributes {dimension_semantics = [#tpu.dimension_semantics<parallel>], iteration_bounds = array<i64: 1>, scalar_prefetch = 0 : i64, scratch_operands = 0 : i64, tpu.core_type = #tpu.core_type<tc>, window_params = [{transform_indices = @transform_0, window_bounds = array<i64: 2, 256>}, {transform_indices = @transform_1, window_bounds = array<i64: 2, 256>}, {transform_indices = @transform_2, window_bounds = array<i64: 1, 2, 128>}]} {
    %0 = tpu.iota {dimensions = array<i32: 0>} : vector<2x1xi32>
    %c2_i32 = arith.constant 2 : i32
    %1 = arith.muli %arg0, %c2_i32 : i32
    %2 = vector.broadcast %1 : i32 to vector<2x1xi32>
    %3 = arith.addi %2, %0 : vector<2x1xi32>
    %c2_i32_0 = arith.constant 2 : i32
    %4 = vector.broadcast %c2_i32_0 : i32 to vector<2x1xi32>
    %5 = arith.cmpi slt, %3, %4 : vector<2x1xi32>
    %c0 = arith.constant 0 : index
    %c0_1 = arith.constant 0 : index
    %6 = vector.load %arg1[%c0, %c0_1] : memref<2x256xf32, #tpu.memory_space<vmem>>, vector<2x256xf32>
    %7 = math.tanh %6 : vector<2x256xf32>
    %cst = arith.constant 0.000000e+00 : f32
    %8 = vector.shape_cast %5 : vector<2x1xi1> to vector<2x1xi1>
    %9 = vector.broadcast %8 : vector<2x1xi1> to vector<2x256xi1>
    %10 = vector.broadcast %cst : f32 to vector<2x256xf32>
    %11 = arith.select %9, %7, %10 : vector<2x256xi1>, vector<2x256xf32>
    %c0_2 = arith.constant 0 : index
    %c0_3 = arith.constant 0 : index
    %12 = vector.load %arg2[%c0_2, %c0_3] : memref<2x256xf32, #tpu.memory_space<vmem>>, vector<2x256xf32>
    %13 = math.tanh %12 : vector<2x256xf32>
    %cst_4 = arith.constant 0.000000e+00 : f32
    %14 = vector.shape_cast %5 : vector<2x1xi1> to vector<2x1xi1>
    %15 = vector.broadcast %14 : vector<2x1xi1> to vector<2x256xi1>
    %16 = vector.broadcast %cst_4 : f32 to vector<2x256xf32>
    %17 = arith.select %15, %13, %16 : vector<2x256xi1>, vector<2x256xf32>
    %18 = arith.subf %11, %17 : vector<2x256xf32>
    %19 = math.absf %18 : vector<2x256xf32>
    %20 = vector.shape_cast %19 : vector<2x256xf32> to vector<1x2x256xf32>
    %cst_5 = arith.constant dense<0.000000e+00> : vector<1xf32>
    %21 = vector.multi_reduction <add>, %20, %cst_5 [1, 2] : vector<1x2x256xf32> to vector<1xf32>
    %22 = vector.shape_cast %21 : vector<1xf32> to vector<1x1x1xf32>
    %23 = vector.extract %22[0, 0, 0] : f32 from vector<1x1x1xf32>
    %24 = tpu.iota {dimensions = array<i32: 1>} : vector<1x256xi32>
    %c16_i32 = arith.constant 16 : i32
    %c0_i32 = arith.constant 0 : i32
    %25 = arith.cmpi eq, %c16_i32, %c0_i32 : i32
    %c1_i32 = arith.constant 1 : i32
    %26 = arith.select %25, %c1_i32, %c16_i32 : i32
    %27 = vector.broadcast %26 : i32 to vector<1x256xi32>
    %28 = arith.remsi %24, %27 : vector<1x256xi32>
    %c0_i32_6 = arith.constant 0 : i32
    %29 = vector.broadcast %c0_i32_6 : i32 to vector<1x256xi32>
    %30 = arith.cmpi ne, %28, %29 : vector<1x256xi32>
    %c0_i32_7 = arith.constant 0 : i32
    %31 = vector.broadcast %c0_i32_7 : i32 to vector<1x256xi32>
    %32 = arith.cmpi slt, %28, %31 : vector<1x256xi32>
    %c0_i32_8 = arith.constant 0 : i32
    %33 = arith.cmpi slt, %26, %c0_i32_8 : i32
    %34 = vector.broadcast %33 : i1 to vector<1x256xi1>
    %35 = vector.broadcast %34 : vector<1x256xi1> to vector<1x256xi1>
    %36 = arith.xori %32, %35 : vector<1x256xi1>
    %37 = arith.andi %36, %30 : vector<1x256xi1>
    %38 = vector.broadcast %26 : i32 to vector<1x256xi32>
    %39 = arith.addi %28, %38 : vector<1x256xi32>
    %40 = arith.select %37, %39, %28 : vector<1x256xi1>, vector<1x256xi32>
    %c0_i32_9 = arith.constant 0 : i32
    %41 = vector.broadcast %c0_i32_9 : i32 to vector<1x256xi32>
    %42 = arith.cmpi ne, %40, %41 : vector<1x256xi32>
    %c15_i32 = arith.constant 15 : i32
    %43 = vector.broadcast %c15_i32 : i32 to vector<1x256xi32>
    %44 = arith.cmpi ne, %40, %43 : vector<1x256xi32>
    %c16_i32_10 = arith.constant 16 : i32
    %45 = vector.broadcast %c16_i32_10 : i32 to vector<1x256xi32>
    %46 = arith.cmpi sge, %24, %45 : vector<1x256xi32>
    %c240_i32 = arith.constant 240 : i32
    %47 = vector.broadcast %c240_i32 : i32 to vector<1x256xi32>
    %48 = arith.cmpi slt, %24, %47 : vector<1x256xi32>
    %c1_i32_11 = arith.constant 1 : i32
    %49 = tpu.dynamic_rotate %11 by %c1_i32_11 dim 1 : vector<2x256xf32>, i32 -> vector<2x256xf32>
    %cst_12 = arith.constant 0.000000e+00 : f32
    %50 = vector.shape_cast %42 : vector<1x256xi1> to vector<1x256xi1>
    %51 = vector.broadcast %50 : vector<1x256xi1> to vector<2x256xi1>
    %52 = vector.broadcast %cst_12 : f32 to vector<2x256xf32>
    %53 = arith.select %51, %49, %52 : vector<2x256xi1>, vector<2x256xf32>
    %c255_i32 = arith.constant 255 : i32
    %54 = tpu.dynamic_rotate %11 by %c255_i32 dim 1 : vector<2x256xf32>, i32 -> vector<2x256xf32>
    %cst_13 = arith.constant 0.000000e+00 : f32
    %55 = vector.shape_cast %44 : vector<1x256xi1> to vector<1x256xi1>
    %56 = vector.broadcast %55 : vector<1x256xi1> to vector<2x256xi1>
    %57 = vector.broadcast %cst_13 : f32 to vector<2x256xf32>
    %58 = arith.select %56, %54, %57 : vector<2x256xi1>, vector<2x256xf32>
    %59 = arith.subf %53, %58 : vector<2x256xf32>
    %cst_14 = arith.constant 2.000000e+00 : f32
    %60 = vector.broadcast %cst_14 : f32 to vector<2x256xf32>
    %61 = arith.mulf %60, %11 : vector<2x256xf32>
    %62 = arith.addf %53, %61 : vector<2x256xf32>
    %63 = arith.addf %62, %58 : vector<2x256xf32>
    %c16_i32_15 = arith.constant 16 : i32
    %64 = tpu.dynamic_rotate %59 by %c16_i32_15 dim 1 : vector<2x256xf32>, i32 -> vector<2x256xf32>
    %cst_16 = arith.constant 0.000000e+00 : f32
    %65 = vector.shape_cast %46 : vector<1x256xi1> to vector<1x256xi1>
    %66 = vector.broadcast %65 : vector<1x256xi1> to vector<2x256xi1>
    %67 = vector.broadcast %cst_16 : f32 to vector<2x256xf32>
    %68 = arith.select %66, %64, %67 : vector<2x256xi1>, vector<2x256xf32>
    %cst_17 = arith.constant 2.000000e+00 : f32
    %69 = vector.broadcast %cst_17 : f32 to vector<2x256xf32>
    %70 = arith.mulf %69, %59 : vector<2x256xf32>
    %71 = arith.addf %68, %70 : vector<2x256xf32>
    %c240_i32_18 = arith.constant 240 : i32
    %72 = tpu.dynamic_rotate %59 by %c240_i32_18 dim 1 : vector<2x256xf32>, i32 -> vector<2x256xf32>
    %cst_19 = arith.constant 0.000000e+00 : f32
    %73 = vector.shape_cast %48 : vector<1x256xi1> to vector<1x256xi1>
    %74 = vector.broadcast %73 : vector<1x256xi1> to vector<2x256xi1>
    %75 = vector.broadcast %cst_19 : f32 to vector<2x256xf32>
    %76 = arith.select %74, %72, %75 : vector<2x256xi1>, vector<2x256xf32>
    %77 = arith.addf %71, %76 : vector<2x256xf32>
    %c16_i32_20 = arith.constant 16 : i32
    %78 = tpu.dynamic_rotate %63 by %c16_i32_20 dim 1 : vector<2x256xf32>, i32 -> vector<2x256xf32>
    %cst_21 = arith.constant 0.000000e+00 : f32
    %79 = vector.shape_cast %46 : vector<1x256xi1> to vector<1x256xi1>
    %80 = vector.broadcast %79 : vector<1x256xi1> to vector<2x256xi1>
    %81 = vector.broadcast %cst_21 : f32 to vector<2x256xf32>
    %82 = arith.select %80, %78, %81 : vector<2x256xi1>, vector<2x256xf32>
    %c240_i32_22 = arith.constant 240 : i32
    %83 = tpu.dynamic_rotate %63 by %c240_i32_22 dim 1 : vector<2x256xf32>, i32 -> vector<2x256xf32>
    %cst_23 = arith.constant 0.000000e+00 : f32
    %84 = vector.shape_cast %48 : vector<1x256xi1> to vector<1x256xi1>
    %85 = vector.broadcast %84 : vector<1x256xi1> to vector<2x256xi1>
    %86 = vector.broadcast %cst_23 : f32 to vector<2x256xf32>
    %87 = arith.select %85, %83, %86 : vector<2x256xi1>, vector<2x256xf32>
    %88 = arith.subf %82, %87 : vector<2x256xf32>
    %89 = arith.mulf %77, %77 : vector<2x256xf32>
    %90 = arith.mulf %88, %88 : vector<2x256xf32>
    %91 = arith.addf %89, %90 : vector<2x256xf32>
    %cst_24 = arith.constant 9.99999997E-7 : f32
    %92 = vector.broadcast %cst_24 : f32 to vector<2x256xf32>
    %93 = arith.maximumf %91, %92 : vector<2x256xf32>
    %94 = math.sqrt %93 : vector<2x256xf32>
    %c1_i32_25 = arith.constant 1 : i32
    %95 = tpu.dynamic_rotate %17 by %c1_i32_25 dim 1 : vector<2x256xf32>, i32 -> vector<2x256xf32>
    %cst_26 = arith.constant 0.000000e+00 : f32
    %96 = vector.shape_cast %42 : vector<1x256xi1> to vector<1x256xi1>
    %97 = vector.broadcast %96 : vector<1x256xi1> to vector<2x256xi1>
    %98 = vector.broadcast %cst_26 : f32 to vector<2x256xf32>
    %99 = arith.select %97, %95, %98 : vector<2x256xi1>, vector<2x256xf32>
    %c255_i32_27 = arith.constant 255 : i32
    %100 = tpu.dynamic_rotate %17 by %c255_i32_27 dim 1 : vector<2x256xf32>, i32 -> vector<2x256xf32>
    %cst_28 = arith.constant 0.000000e+00 : f32
    %101 = vector.shape_cast %44 : vector<1x256xi1> to vector<1x256xi1>
    %102 = vector.broadcast %101 : vector<1x256xi1> to vector<2x256xi1>
    %103 = vector.broadcast %cst_28 : f32 to vector<2x256xf32>
    %104 = arith.select %102, %100, %103 : vector<2x256xi1>, vector<2x256xf32>
    %105 = arith.subf %99, %104 : vector<2x256xf32>
    %cst_29 = arith.constant 2.000000e+00 : f32
    %106 = vector.broadcast %cst_29 : f32 to vector<2x256xf32>
    %107 = arith.mulf %106, %17 : vector<2x256xf32>
    %108 = arith.addf %99, %107 : vector<2x256xf32>
    %109 = arith.addf %108, %104 : vector<2x256xf32>
    %c16_i32_30 = arith.constant 16 : i32
    %110 = tpu.dynamic_rotate %105 by %c16_i32_30 dim 1 : vector<2x256xf32>, i32 -> vector<2x256xf32>
    %cst_31 = arith.constant 0.000000e+00 : f32
    %111 = vector.shape_cast %46 : vector<1x256xi1> to vector<1x256xi1>
    %112 = vector.broadcast %111 : vector<1x256xi1> to vector<2x256xi1>
    %113 = vector.broadcast %cst_31 : f32 to vector<2x256xf32>
    %114 = arith.select %112, %110, %113 : vector<2x256xi1>, vector<2x256xf32>
    %cst_32 = arith.constant 2.000000e+00 : f32
    %115 = vector.broadcast %cst_32 : f32 to vector<2x256xf32>
    %116 = arith.mulf %115, %105 : vector<2x256xf32>
    %117 = arith.addf %114, %116 : vector<2x256xf32>
    %c240_i32_33 = arith.constant 240 : i32
    %118 = tpu.dynamic_rotate %105 by %c240_i32_33 dim 1 : vector<2x256xf32>, i32 -> vector<2x256xf32>
    %cst_34 = arith.constant 0.000000e+00 : f32
    %119 = vector.shape_cast %48 : vector<1x256xi1> to vector<1x256xi1>
    %120 = vector.broadcast %119 : vector<1x256xi1> to vector<2x256xi1>
    %121 = vector.broadcast %cst_34 : f32 to vector<2x256xf32>
    %122 = arith.select %120, %118, %121 : vector<2x256xi1>, vector<2x256xf32>
    %123 = arith.addf %117, %122 : vector<2x256xf32>
    %c16_i32_35 = arith.constant 16 : i32
    %124 = tpu.dynamic_rotate %109 by %c16_i32_35 dim 1 : vector<2x256xf32>, i32 -> vector<2x256xf32>
    %cst_36 = arith.constant 0.000000e+00 : f32
    %125 = vector.shape_cast %46 : vector<1x256xi1> to vector<1x256xi1>
    %126 = vector.broadcast %125 : vector<1x256xi1> to vector<2x256xi1>
    %127 = vector.broadcast %cst_36 : f32 to vector<2x256xf32>
    %128 = arith.select %126, %124, %127 : vector<2x256xi1>, vector<2x256xf32>
    %c240_i32_37 = arith.constant 240 : i32
    %129 = tpu.dynamic_rotate %109 by %c240_i32_37 dim 1 : vector<2x256xf32>, i32 -> vector<2x256xf32>
    %cst_38 = arith.constant 0.000000e+00 : f32
    %130 = vector.shape_cast %48 : vector<1x256xi1> to vector<1x256xi1>
    %131 = vector.broadcast %130 : vector<1x256xi1> to vector<2x256xi1>
    %132 = vector.broadcast %cst_38 : f32 to vector<2x256xf32>
    %133 = arith.select %131, %129, %132 : vector<2x256xi1>, vector<2x256xf32>
    %134 = arith.subf %128, %133 : vector<2x256xf32>
    %135 = arith.mulf %123, %123 : vector<2x256xf32>
    %136 = arith.mulf %134, %134 : vector<2x256xf32>
    %137 = arith.addf %135, %136 : vector<2x256xf32>
    %cst_39 = arith.constant 9.99999997E-7 : f32
    %138 = vector.broadcast %cst_39 : f32 to vector<2x256xf32>
    %139 = arith.maximumf %137, %138 : vector<2x256xf32>
    %140 = math.sqrt %139 : vector<2x256xf32>
    %141 = arith.subf %94, %140 : vector<2x256xf32>
    %142 = math.absf %141 : vector<2x256xf32>
    %143 = vector.shape_cast %142 : vector<2x256xf32> to vector<1x2x256xf32>
    %cst_40 = arith.constant dense<0.000000e+00> : vector<1xf32>
    %144 = vector.multi_reduction <add>, %143, %cst_40 [1, 2] : vector<1x2x256xf32> to vector<1xf32>
    %145 = vector.shape_cast %144 : vector<1xf32> to vector<1x1x1xf32>
    %146 = vector.extract %145[0, 0, 0] : f32 from vector<1x1x1xf32>
    %147 = tpu.iota {dimensions = array<i32: 1>} : vector<1x2x128xi32>
    %c0_i32_41 = arith.constant 0 : i32
    %148 = vector.broadcast %c0_i32_41 : i32 to vector<1x2x128xi32>
    %149 = arith.cmpi eq, %147, %148 : vector<1x2x128xi32>
    %150 = vector.broadcast %23 : f32 to vector<1x2x128xf32>
    %151 = vector.broadcast %146 : f32 to vector<1x2x128xf32>
    %152 = arith.select %149, %150, %151 : vector<1x2x128xi1>, vector<1x2x128xf32>
    %c0_42 = arith.constant 0 : index
    %c0_43 = arith.constant 0 : index
    %c0_44 = arith.constant 0 : index
    %153 = vector.load %arg3[%c0_42, %c0_43, %c0_44] : memref<1x2x128xf32, #tpu.memory_space<vmem>>, vector<1x2x128xf32>
    tpu.vector_store %arg3[%c0_42, %c0_43, %c0_44], %152 {strides = array<i32>} : memref<1x2x128xf32, #tpu.memory_space<vmem>>, vector<1x2x128xf32>,
    return
  }
  func.func @transform_0(%arg0: i32) -> (i32, i32) {
    %c0_i32 = arith.constant 0 : i32
    %c0_i32_0 = arith.constant 0 : i32
    return %arg0, %c0_i32 : i32, i32
  }
  func.func @transform_1(%arg0: i32) -> (i32, i32) {
    %c0_i32 = arith.constant 0 : i32
    %c0_i32_0 = arith.constant 0 : i32
    return %arg0, %c0_i32 : i32, i32
  }
  func.func @transform_2(%arg0: i32) -> (i32, i32, i32) {
    %c0_i32 = arith.constant 0 : i32
    %c0_i32_0 = arith.constant 0 : i32
    %c0_i32_1 = arith.constant 0 : i32
    return %arg0, %c0_i32, %c0_i32_0 : i32, i32, i32
  }
}

</mosaic_0001>

<llo_original>
// kernel: tpu_custom_call.1
$region0: #{tpu_custom_call.1}
  #allocation0 [shape = 'u32[]', space=smem, size = 0x4, offset = 0x4, fixed_abs, tag = 'smem constant byte address 0x4 - core index']
  #allocation1 [shape = 'u32[144,128]{1,0:T(1,128)}', space=vmem, size = 0x12000, scoped, tag = 'internal scratch']
  %s0 = inlined_call_operand.hbm [shape: f32[2,256], index: 0, kind: input, shape index: {}]
  %s1 = inlined_call_operand.hbm [shape: f32[2,256], index: 1, kind: input, shape index: {}]
  %s2 = inlined_call_operand.hbm [shape: f32[1,2,128], index: 2, kind: output, shape index: {}]
  %s3 = sld [smem:[#allocation0]]
  $region26: #{tpu_custom_call.1} parent=0
    _
  %s5 = ssub.s32 1, %s3
  %s6 = scalar_select 0, %s5, %s3
  $region1: #{tpu_custom_call.1} parent=0
    #allocation2 [shape = 'u8[2048]{0}', space=vmem, size = 0x800, scoped, tag = 'input window, operand 0, single buffered']
    #allocation3 [shape = 's32[1]{0}', space=sflag, size = 0x4, scoped, tag = 'scoped memory for tpu_custom_call.1']
    #allocation4 [shape = 's32[1]{0}', space=sflag, size = 0x4, scoped, tag = 'scoped memory for tpu_custom_call.1']
    #allocation5 [shape = 'u8[2048]{0}', space=vmem, size = 0x800, scoped, tag = 'input window, operand 1, single buffered']
    #allocation6 [shape = 's32[1]{0}', space=sflag, size = 0x4, scoped, tag = 'scoped memory for tpu_custom_call.1']
    #allocation7 [shape = 'u8[1024]{0}', space=vmem, size = 0x400, scoped, tag = 'output window, operand 0, single buffered']
    %7 = vsyncpa [#allocation3], 0
    %8 = vsyncpa [#allocation6], 0
    %9 = vsyncpa [#allocation4], 0
    // Predicated region
    $region2: #{tpu_custom_call.1} parent=1 // pred_check
      _
    $region3: #{tpu_custom_call.1} parent=1 // pred_check_branch
      %11 = sbr.rel (0) target = $region5
    $region4: #{tpu_custom_call.1} parent=1 // pred_region
      %s13 = ssub.s32 64, 64
      %14 = vsyncadd [#allocation3], %s13
      %s16 = sshll.u32 [#allocation2], 4
      %s17 = int_to_ptr.vmem [resolvable:$true] %s16
      %19 = dma.hbm_to_vmem [thread:$0]  %s0, 64, %s17, [#allocation3]
    $region5: #{tpu_custom_call.1} parent=1 // pred_fallthru
      _
    // Predicated region
    $region6: #{tpu_custom_call.1} parent=1 // pred_check
      _
    $region7: #{tpu_custom_call.1} parent=1 // pred_check_branch
      %21 = sbr.rel (0) target = $region9
    $region8: #{tpu_custom_call.1} parent=1 // pred_region
      %s23 = ssub.s32 64, 64
      %24 = vsyncadd [#allocation6], %s23
      %s26 = sshll.u32 [#allocation5], 4
      %s27 = int_to_ptr.vmem [resolvable:$true] %s26
      %29 = dma.hbm_to_vmem [thread:$0]  %s1, 64, %s27, [#allocation6]
    $region9: #{tpu_custom_call.1} parent=1 // pred_fallthru
      _
    // Predicated region
    $region10: #{tpu_custom_call.1} parent=1 // pred_check
      _
    $region11: #{tpu_custom_call.1} parent=1 // pred_check_branch
      %31 = sbr.rel (0) target = $region13
    $region12: #{tpu_custom_call.1} parent=1 // pred_region
      %32 = dma.done [#allocation3], 64
    $region13: #{tpu_custom_call.1} parent=1 // pred_fallthru
      _
    // Predicated region
    $region14: #{tpu_custom_call.1} parent=1 // pred_check
      _
    $region15: #{tpu_custom_call.1} parent=1 // pred_check_branch
      %34 = sbr.rel (0) target = $region17
    $region16: #{tpu_custom_call.1} parent=1 // pred_region
      %35 = dma.done [#allocation6], 64
    $region17: #{tpu_custom_call.1} parent=1 // pred_fallthru
      _
    %v36 = vlaneseq
    %v37 = vshrl.u32 %v36, 7
    %s38 = smul.u32 0, 2
    %v39 = vstv %s38
    %v40 = vadd.s32 %v39, %v37
    %vm41 = vcmp.lt.s32.totalorder %v40, 2
    %v42 = vld [vmem:[#allocation2] sm:$0xf]
    %v43 = vtanh.pop %v42
    %v44 = vsel %vm41, 1, 0
    %vm45 = vcmp.eq.s32.totalorder %v44, 1
    %v48 = vunpack.c.l.s4 1983009808
    %v49 = vunpack.c.0.s8 %v48
    %v50 = vlaneseq
    %v51 = vshrl.u32 %v50, 7
    %v52 = vsub.s32 %v49, %v51
    %v53 = vrot.slane %v43, %v52
    %v54 = vcombine.high %v53, %v53
    %v57 = vsel %vm45, %v53, 0.0
    %v58 = vsel %vm45, %v54, 0.0
    %v59 = vld [vmem:[#allocation5] sm:$0xf]
    %v60 = vtanh.pop %v59
    %v63 = vunpack.c.l.s4 1983009808
    %v64 = vunpack.c.0.s8 %v63
    %v65 = vlaneseq
    %v66 = vshrl.u32 %v65, 7
    %v67 = vsub.s32 %v64, %v66
    %v68 = vrot.slane %v60, %v67
    %v69 = vcombine.high %v68, %v68
    %v72 = vsel %vm45, %v68, 0.0
    %v73 = vsel %vm45, %v69, 0.0
    %v74 = vsub.f32 %v57, %v72
    %v75 = vsub.f32 %v58, %v73
    %v76 = vand.u32 2147483647, %v74
    %v77 = vand.u32 2147483647, %v75
    %vm78 = vcmask 1041408
    %v79 = vsel %vm78, %v76, 0.0
    %v80 = vsel %vm78, %v77, 0.0
    %v81 = vadd.f32 %v79, %v80
    %82 = vadd.xlane.f32.xlu0 %v81
    %v83 = vpop.xlane.xlu0 %82
    %v84 = vrot.slane %v83, 4
    %v85 = vadd.f32 %v83, %v84
    %v86 = vrot.slane %v85, 2
    %v87 = vadd.f32 %v85, %v86
    %v88 = vrot.slane %v87, 1
    %v89 = vadd.f32 %v87, %v88
    %s90 = vtos %v89
    %v91 = vlaneseq
    %v92 = vand.u32 %v91, 127
    %v93 = vadd.s32 %v92, 128
    %vm94 = vcmp.lt.s32.totalorder %v92, 0
    %v95 = vsub.s32 0, %v92
    %v96 = vsel %vm94, %v95, %v92
    %v97 = vshrl.u32 %v96, 4
    %v98 = vand.u32 %v96, 15
    %v99 = vsub.s32 0, %v98
    %v100 = vsel %vm94, %v99, %v98
    %vm101 = vcmp.lt.s32.totalorder %v93, 0
    %v102 = vsub.s32 0, %v93
    %v103 = vsel %vm101, %v102, %v93
    %v104 = vshrl.u32 %v103, 4
    %v105 = vand.u32 %v103, 15
    %v106 = vsub.s32 0, %v105
    %v107 = vsel %vm101, %v106, %v105
    %vm108 = vcmp.ne.s32.totalorder %v100, 0
    %vm109 = vcmp.ne.s32.totalorder %v107, 0
    %vm110 = vcmp.lt.s32.totalorder %v100, 0
    %vm111 = vcmp.lt.s32.totalorder %v107, 0
    %vm112 = vmand %vm110, %vm108
    %vm113 = vmand %vm111, %vm109
    %v114 = vadd.s32 %v100, 16
    %v115 = vadd.s32 %v107, 16
    %v116 = vsel %vm112, %v114, %v100
    %v117 = vsel %vm113, %v115, %v107
    %vm118 = vcmp.ne.s32.totalorder %v116, 0
    %vm119 = vcmp.ne.s32.totalorder %v117, 0
    %vm120 = vcmp.ne.s32.totalorder %v116, 15
    %vm121 = vcmp.ne.s32.totalorder %v117, 15
    %vm122 = vcmp.ge.s32.totalorder %v92, 16
    %vm123 = vcmp.ge.s32.totalorder %v93, 16
    %vm124 = vcmp.lt.s32.totalorder %v92, 240
    %vm125 = vcmp.lt.s32.totalorder %v93, 240
    %126 = vrot.lane.b32.xlu0 %v57, 1
    %v127 = vpop.permute.xlu0 %126
    %128 = vrot.lane.b32.xlu0 %v58, 1
    %v129 = vpop.permute.xlu0 %128
    %vm130 = vcmp.lt.s32.totalorder %v92, 1
    %v131 = vsel %vm130, %v127, %v129
    %v132 = vsel %vm130, %v129, %v127
    %v133 = vsel %vm118, 1, 0
    %v134 = vsel %vm119, 1, 0
    %vm135 = vcmp.eq.s32.totalorder %v133, 1
    %vm136 = vcmp.eq.s32.totalorder %v134, 1
    %v137 = vsel %vm135, %v132, 0.0
    %v138 = vsel %vm136, %v131, 0.0
    %139 = vrot.lane.b32.xlu0 %v57, 127
    %v140 = vpop.permute.xlu0 %139
    %141 = vrot.lane.b32.xlu0 %v58, 127
    %v142 = vpop.permute.xlu0 %141
    %vm143 = vcmp.lt.s32.totalorder %v92, 127
    %v144 = vsel %vm143, %v140, %v142
    %v145 = vsel %vm143, %v142, %v140
    %v146 = vsel %vm120, 1, 0
    %v147 = vsel %vm121, 1, 0
    %vm148 = vcmp.eq.s32.totalorder %v146, 1
    %vm149 = vcmp.eq.s32.totalorder %v147, 1
    %v150 = vsel %vm148, %v144, 0.0
    %v151 = vsel %vm149, %v145, 0.0
    %v152 = vsub.f32 %v137, %v150
    %v153 = vsub.f32 %v138, %v151
    %v154 = vmul.f32 %v57, 2.0
    %v155 = vmul.f32 %v58, 2.0
    %v156 = vadd.f32 %v137, %v154
    %v157 = vadd.f32 %v138, %v155
    %v158 = vadd.f32 %v156, %v150
    %v159 = vadd.f32 %v157, %v151
    %160 = vrot.lane.b32.xlu0 %v152, 16
    %v161 = vpop.permute.xlu0 %160
    %162 = vrot.lane.b32.xlu0 %v153, 16
    %v163 = vpop.permute.xlu0 %162
    %vm164 = vcmp.lt.s32.totalorder %v92, 16
    %v165 = vsel %vm164, %v161, %v163
    %v166 = vsel %vm164, %v163, %v161
    %v167 = vsel %vm122, 1, 0
    %v168 = vsel %vm123, 1, 0
    %vm169 = vcmp.eq.s32.totalorder %v167, 1
    %vm170 = vcmp.eq.s32.totalorder %v168, 1
    %v171 = vsel %vm169, %v166, 0.0
    %v172 = vsel %vm170, %v165, 0.0
    %v173 = vmul.f32 %v152, 2.0
    %v174 = vmul.f32 %v153, 2.0
    %v175 = vadd.f32 %v171, %v173
    %v176 = vadd.f32 %v172, %v174
    %177 = vrot.lane.b32.xlu0 %v152, 112
    %v178 = vpop.permute.xlu0 %177
    %179 = vrot.lane.b32.xlu0 %v153, 112
    %v180 = vpop.permute.xlu0 %179
    %vm181 = vcmp.lt.s32.totalorder %v92, 112
    %v182 = vsel %vm181, %v178, %v180
    %v183 = vsel %vm181, %v180, %v178
    %v184 = vsel %vm124, 1, 0
    %v185 = vsel %vm125, 1, 0
    %vm186 = vcmp.eq.s32.totalorder %v184, 1
    %vm187 = vcmp.eq.s32.totalorder %v185, 1
    %v188 = vsel %vm186, %v182, 0.0
    %v189 = vsel %vm187, %v183, 0.0
    %v190 = vadd.f32 %v175, %v188
    %v191 = vadd.f32 %v176, %v189
    %192 = vrot.lane.b32.xlu0 %v158, 16
    %v193 = vpop.permute.xlu0 %192
    %194 = vrot.lane.b32.xlu0 %v159, 16
    %v195 = vpop.permute.xlu0 %194
    %v196 = vsel %vm164, %v193, %v195
    %v197 = vsel %vm164, %v195, %v193
    %v198 = vsel %vm169, %v197, 0.0
    %v199 = vsel %vm170, %v196, 0.0
    %200 = vrot.lane.b32.xlu0 %v158, 112
    %v201 = vpop.permute.xlu0 %200
    %202 = vrot.lane.b32.xlu0 %v159, 112
    %v203 = vpop.permute.xlu0 %202
    %v204 = vsel %vm181, %v201, %v203
    %v205 = vsel %vm181, %v203, %v201
    %v206 = vsel %vm186, %v204, 0.0
    %v207 = vsel %vm187, %v205, 0.0
    %v208 = vsub.f32 %v198, %v206
    %v209 = vsub.f32 %v199, %v207
    %v210 = vmul.f32 %v190, %v190
    %v211 = vmul.f32 %v191, %v191
    %v212 = vmul.f32 %v208, %v208
    %v213 = vmul.f32 %v209, %v209
    %v214 = vadd.f32 %v210, %v212
    %v215 = vadd.f32 %v211, %v213
    %v216 = vmax.f32 %v214, 1e-06
    %v217 = vmax.f32 %v215, 1e-06
    %v218 = vrsqrt.pop %v216
    %v219 = vmul.f32 %v216, %v218
    %vm220 = vcmp.eq.f32.partialorder %v216, inf
    %v221 = vsel %vm220, %v216, %v219
    %vm222 = vcmp.eq.f32.partialorder %v216, 0.0
    %v223 = vand.u32 %v216, 2147483648
    %v224 = vsel %vm222, %v223, %v221
    %v225 = vrsqrt.pop %v217
    %v226 = vmul.f32 %v217, %v225
    %vm227 = vcmp.eq.f32.partialorder %v217, inf
    %v228 = vsel %vm227, %v217, %v226
    %vm229 = vcmp.eq.f32.partialorder %v217, 0.0
    %v230 = vand.u32 %v217, 2147483648
    %v231 = vsel %vm229, %v230, %v228
    %232 = vrot.lane.b32.xlu0 %v72, 1
    %v233 = vpop.permute.xlu0 %232
    %234 = vrot.lane.b32.xlu0 %v73, 1
    %v235 = vpop.permute.xlu0 %234
    %v236 = vsel %vm130, %v233, %v235
    %v237 = vsel %vm130, %v235, %v233
    %v238 = vsel %vm135, %v237, 0.0
    %v239 = vsel %vm136, %v236, 0.0
    %240 = vrot.lane.b32.xlu0 %v72, 127
    %v241 = vpop.permute.xlu0 %240
    %242 = vrot.lane.b32.xlu0 %v73, 127
    %v243 = vpop.permute.xlu0 %242
    %v244 = vsel %vm143, %v241, %v243
    %v245 = vsel %vm143, %v243, %v241
    %v246 = vsel %vm148, %v244, 0.0
    %v247 = vsel %vm149, %v245, 0.0
    %v248 = vsub.f32 %v238, %v246
    %v249 = vsub.f32 %v239, %v247
    %v250 = vmul.f32 %v72, 2.0
    %v251 = vmul.f32 %v73, 2.0
    %v252 = vadd.f32 %v238, %v250
    %v253 = vadd.f32 %v239, %v251
    %v254 = vadd.f32 %v252, %v246
    %v255 = vadd.f32 %v253, %v247
    %256 = vrot.lane.b32.xlu0 %v248, 16
    %v257 = vpop.permute.xlu0 %256
    %258 = vrot.lane.b32.xlu0 %v249, 16
    %v259 = vpop.permute.xlu0 %258
    %v260 = vsel %vm164, %v257, %v259
    %v261 = vsel %vm164, %v259, %v257
    %v262 = vsel %vm169, %v261, 0.0
    %v263 = vsel %vm170, %v260, 0.0
    %v264 = vmul.f32 %v248, 2.0
    %v265 = vmul.f32 %v249, 2.0
    %v266 = vadd.f32 %v262, %v264
    %v267 = vadd.f32 %v263, %v265
    %268 = vrot.lane.b32.xlu0 %v248, 112
    %v269 = vpop.permute.xlu0 %268
    %270 = vrot.lane.b32.xlu0 %v249, 112
    %v271 = vpop.permute.xlu0 %270
    %v272 = vsel %vm181, %v269, %v271
    %v273 = vsel %vm181, %v271, %v269
    %v274 = vsel %vm186, %v272, 0.0
    %v275 = vsel %vm187, %v273, 0.0
    %v276 = vadd.f32 %v266, %v274
    %v277 = vadd.f32 %v267, %v275
    %278 = vrot.lane.b32.xlu0 %v254, 16
    %v279 = vpop.permute.xlu0 %278
    %280 = vrot.lane.b32.xlu0 %v255, 16
    %v281 = vpop.permute.xlu0 %280
    %v282 = vsel %vm164, %v279, %v281
    %v283 = vsel %vm164, %v281, %v279
    %v284 = vsel %vm169, %v283, 0.0
    %v285 = vsel %vm170, %v282, 0.0
    %286 = vrot.lane.b32.xlu0 %v254, 112
    %v287 = vpop.permute.xlu0 %286
    %288 = vrot.lane.b32.xlu0 %v255, 112
    %v289 = vpop.permute.xlu0 %288
    %v290 = vsel %vm181, %v287, %v289
    %v291 = vsel %vm181, %v289, %v287
    %v292 = vsel %vm186, %v290, 0.0
    %v293 = vsel %vm187, %v291, 0.0
    %v294 = vsub.f32 %v284, %v292
    %v295 = vsub.f32 %v285, %v293
    %v296 = vmul.f32 %v276, %v276
    %v297 = vmul.f32 %v277, %v277
    %v298 = vmul.f32 %v294, %v294
    %v299 = vmul.f32 %v295, %v295
    %v300 = vadd.f32 %v296, %v298
    %v301 = vadd.f32 %v297, %v299
    %v302 = vmax.f32 %v300, 1e-06
    %v303 = vmax.f32 %v301, 1e-06
    %v304 = vrsqrt.pop %v302
    %v305 = vmul.f32 %v302, %v304
    %vm306 = vcmp.eq.f32.partialorder %v302, inf
    %v307 = vsel %vm306, %v302, %v305
    %vm308 = vcmp.eq.f32.partialorder %v302, 0.0
    %v309 = vand.u32 %v302, 2147483648
    %v310 = vsel %vm308, %v309, %v307
    %v311 = vrsqrt.pop %v303
    %v312 = vmul.f32 %v303, %v311
    %vm313 = vcmp.eq.f32.partialorder %v303, inf
    %v314 = vsel %vm313, %v303, %v312
    %vm315 = vcmp.eq.f32.partialorder %v303, 0.0
    %v316 = vand.u32 %v303, 2147483648
    %v317 = vsel %vm315, %v316, %v314
    %v318 = vsub.f32 %v224, %v310
    %v319 = vsub.f32 %v231, %v317
    %v320 = vand.u32 2147483647, %v318
    %v321 = vand.u32 2147483647, %v319
    %v322 = vsel %vm78, %v320, 0.0
    %v323 = vsel %vm78, %v321, 0.0
    %v324 = vadd.f32 %v322, %v323
    %325 = vadd.xlane.f32.xlu0 %v324
    %v326 = vpop.xlane.xlu0 %325
    %v327 = vrot.slane %v326, 4
    %v328 = vadd.f32 %v326, %v327
    %v329 = vrot.slane %v328, 2
    %v330 = vadd.f32 %v328, %v329
    %v331 = vrot.slane %v330, 1
    %v332 = vadd.f32 %v330, %v331
    %s333 = vtos %v332
    %vm334 = vcmp.eq.s32.totalorder %v37, 0
    %v335 = vstv %s90
    %v336 = vstv %s333
    %v337 = vsel %vm334, %v335, %v336
    %338 = vst [vmem:[#allocation7] sm:$0x3] %v337
    // Predicated region
    $region18: #{tpu_custom_call.1} parent=1 // pred_check
      _
    $region19: #{tpu_custom_call.1} parent=1 // pred_check_branch
      %340 = sbr.rel (0) target = $region21
    $region20: #{tpu_custom_call.1} parent=1 // pred_region
      %s342 = ssub.s32 32, 32
      %343 = vsyncadd [#allocation4], %s342
      %s345 = sshll.u32 [#allocation7], 4
      %s346 = int_to_ptr.vmem [resolvable:$true] %s345
      %348 = dma.vmem_to_hbm [thread:$0]  %s346, 32, %s2, [#allocation4]
    $region21: #{tpu_custom_call.1} parent=1 // pred_fallthru
      _
    // Predicated region
    $region22: #{tpu_custom_call.1} parent=1 // pred_check
      _
    $region23: #{tpu_custom_call.1} parent=1 // pred_check_branch
      %350 = sbr.rel (0) target = $region25
    $region24: #{tpu_custom_call.1} parent=1 // pred_region
      %351 = dma.done [#allocation4], 32
    $region25: #{tpu_custom_call.1} parent=1 // pred_fallthru
      _
    %352 = vsyncpa [#allocation3], 1
    %353 = vsyncpa [#allocation6], 1
    %354 = vsyncpa [#allocation4], 1

</llo_original>
